<compile_context>
chip_gen: v5e
topology: v5e:2x2
jax: 0.10.0
libtpu: 0.0.40
codegen_flags: <defaults>
</compile_context>

<pallas_src>
import jax
import jax.numpy as jnp
from jax.experimental import pallas as pl
from jax.experimental.pallas import tpu as pltpu


def _ray_dirs_kernel(coef_ref, grid_ref, dirs_ref):
    """coef_ref: SMEM (B*9,) f32 ; grid_ref: VMEM (2, TM) f32 ; dirs_ref: VMEM (1, 3, TM) f32."""
    b = pl.program_id(1)          # batch is the inner grid axis
    base = b * 9

    x_cam = grid_ref[0:1, :]      # (1, TM)
    y_cam = grid_ref[1:2, :]      # (1, TM)

    # d[c] = A[c]*x_cam + B[c]*y_cam + C[c]   (== R^T @ [x_lift, y_lift, 1])
    d0 = coef_ref[base + 0] * x_cam + coef_ref[base + 3] * y_cam + coef_ref[base + 6]
    d1 = coef_ref[base + 1] * x_cam + coef_ref[base + 4] * y_cam + coef_ref[base + 7]
    d2 = coef_ref[base + 2] * x_cam + coef_ref[base + 5] * y_cam + coef_ref[base + 8]

    # F.normalize(dim=2): v / max(||v||, 1e-12)  ==  v * rsqrt(max(||v||^2, 1e-24)).
    # ||v|| >= 1 here (orthonormal R^T applied to [x_lift, y_lift, 1]), so the clamp
    # never changes the result.
    inv = jax.lax.rsqrt(jnp.maximum(d0 * d0 + d1 * d1 + d2 * d2, jnp.float32(1e-24)))

    # Direct row stores — no concatenate along sublanes.
    dirs_ref[0, 0:1, :] = d0 * inv
    dirs_ref[0, 1:2, :] = d1 * inv
    dirs_ref[0, 2:3, :] = d2 * inv


def _choose_tile_m(M, cap=65536):
    """Largest lane tile (multiple of 128, <= cap) that divides M; M itself if small."""
    if M <= cap:
        return M
    tm = (cap // 128) * 128
    while tm >= 128:
        if M % tm == 0:
            return tm
        tm -= 128
    return M  # fallback: single full-M block (still well under the VMEM limit)


def ray_sampler(extr, intr, resolution):
    """extr: (N,4,4), intr: (N,3,3) -> (ray_origins (N,M,3), ray_dirs (N,M,3))."""
    extr = extr.astype(jnp.float32)
    intr = intr.astype(jnp.float32)
    B = extr.shape[0]
    M = resolution * resolution

    # ---- per-camera scalar prep (tiny O(B) work; plain JAX) ----
    R = extr[:, :3, :3]                                  # world2cam rotation
    tvec = extr[:, :3, 3]
    Rt = jnp.swapaxes(R, 1, 2)                           # cam2world rotation
    t = -jnp.einsum("bij,bj->bi", Rt, tvec)              # camera centers, (B, 3)

    fx = intr[:, 0, 0]
    fy = intr[:, 1, 1]
    cx = intr[:, 0, 2]
    cy = intr[:, 1, 2]
    sk = intr[:, 0, 1]
    inv_fx = 1.0 / fx
    inv_fy = 1.0 / fy
    # x_lift = a_xx*x + a_xy*y + a_x0 ; y_lift = a_yy*y + a_y0
    a_xx = inv_fx
    a_xy = -sk * inv_fy * inv_fx
    a_x0 = (cy * sk * inv_fy - cx) * inv_fx
    a_yy = inv_fy
    a_y0 = -cy * inv_fy

    # d[c] = A[c]*x + B[c]*y + C[c]  with d = R^T @ [x_lift, y_lift, 1]
    A_ = Rt[:, :, 0] * a_xx[:, None]                                        # (B, 3)
    B_ = Rt[:, :, 0] * a_xy[:, None] + Rt[:, :, 1] * a_yy[:, None]          # (B, 3)
    C_ = Rt[:, :, 0] * a_x0[:, None] + Rt[:, :, 1] * a_y0[:, None] + Rt[:, :, 2]
    coef = jnp.concatenate([A_, B_, C_], axis=1).reshape(-1).astype(jnp.float32)  # (B*9,)

    # ---- batch-invariant pixel grid, hoisted out of the kernel ----
    u = jnp.arange(resolution, dtype=jnp.float32) + 0.5
    yy, xx = jnp.meshgrid(u, u, indexing="ij")           # flip(0): x = u[j], y = u[i]
    grid = jnp.stack([xx.reshape(-1), yy.reshape(-1)], axis=0)   # (2, M): row0=x, row1=y

    TM = _choose_tile_m(M)
    grid_m = M // TM

    # Grid = (M-tiles, batch).  Batch is the inner (fastest) axis so the pixel-grid
    # block (index (0, m)) is unchanged across it and only DMA'd once per M-tile.
    dirs_t = pl.pallas_call(
        _ray_dirs_kernel,
        out_shape=jax.ShapeDtypeStruct((B, 3, M), jnp.float32),
        grid_spec=pltpu.PrefetchScalarGridSpec(
            num_scalar_prefetch=0,
            grid=(grid_m, B),
            in_specs=[
                pl.BlockSpec(memory_space=pltpu.MemorySpace.SMEM),     # coef (B*9,)
                pl.BlockSpec((2, TM), lambda m, b: (0, m)),            # pixel grid
            ],
            out_specs=pl.BlockSpec((1, 3, TM), lambda m, b: (b, 0, m)),
        ),
        compiler_params=pltpu.CompilerParams(
            dimension_semantics=("parallel", "parallel")),
    )(coef, grid)

    # Origins are a trivial per-camera broadcast — no kernel writeback needed.
    ray_origins = jnp.broadcast_to(t[:, None, :], (B, M, 3))
    # Kept for PyTorch API fidelity; TPU consumers should use the (N, 3, M) layout.
    ray_dirs = jnp.transpose(dirs_t, (0, 2, 1))          # (N, M, 3)
    return ray_origins, ray_dirs


def ray_sampler_ref(extr, intr, resolution):
    """Pure-JAX reference mirroring the PyTorch module."""
    B = extr.shape[0]
    u = jnp.arange(resolution, dtype=jnp.float32) + 0.5
    ii, jj = jnp.meshgrid(u, u, indexing="ij")           # flip(0): x = u[j], y = u[i]
    x_cam = jnp.tile(jj.reshape(1, -1), (B, 1))
    y_cam = jnp.tile(ii.reshape(1, -1), (B, 1))
    fx = intr[:, 0, 0][:, None]
    fy = intr[:, 1, 1][:, None]
    cx = intr[:, 0, 2][:, None]
    cy = intr[:, 1, 2][:, None]
    sk = intr[:, 0, 1][:, None]
    x_lift = (x_cam - cx + cy * sk / fy - sk * y_cam / fy) / fx
    y_lift = (y_cam - cy) / fy
    z = jnp.ones_like(x_lift)
    cam_pts = jnp.stack([x_lift, y_lift, z], axis=-1)    # (B, M, 3)

    R = extr[:, :3, :3]
    tvec = extr[:, :3, 3]
    Rt = jnp.swapaxes(R, 1, 2)
    t = -jnp.einsum("bij,bj->bi", Rt, tvec)
    world = jnp.einsum("bij,bmj->bmi", Rt, cam_pts) + t[:, None, :]
    dirs = world - t[:, None, :]
    dirs = dirs / jnp.maximum(jnp.linalg.norm(dirs, axis=2, keepdims=True), 1e-12)
    origins = jnp.tile(t[:, None, :], (1, cam_pts.shape[1], 1))
    return origins, dirs


if __name__ == "__main__":
    B, resolution = 2, 16                     # M = 256
    key = jax.random.PRNGKey(0)
    k1, k2 = jax.random.split(key)

    # Deterministic "camera" extrinsics: proper rotation + random translation.
    A = jax.random.normal(k1, (B, 3, 3), jnp.float32)
    Q, _ = jnp.linalg.qr(A)
    tvec = jax.random.normal(k2, (B, 3), jnp.float32)
    extr = jnp.zeros((B, 4, 4), jnp.float32)
    extr = extr.at[:, :3, :3].set(Q)
    extr = extr.at[:, :3, 3].set(tvec)
    extr = extr.at[:, 3, 3].set(1.0)

    # Per-batch intrinsics with skew.
    intr = jnp.stack([
        jnp.array([[18.0 + 2.0 * b, 0.3, resolution / 2.0],
                   [0.0, 21.0 + 1.0 * b, resolution / 2.0],
                   [0.0, 0.0, 1.0]], jnp.float32)
        for b in range(B)
    ])

    ray_origins, ray_dirs = ray_sampler(extr, intr, resolution)
    jax.block_until_ready((ray_origins, ray_dirs))

    ro_ref, rd_ref = ray_sampler_ref(extr, intr, resolution)
    assert ray_origins.shape == (B, resolution ** 2, 3)
    assert ray_dirs.shape == (B, resolution ** 2, 3)
    assert jnp.allclose(ray_origins, ro_ref, atol=1e-5, rtol=1e-5)
    assert jnp.allclose(ray_dirs, rd_ref, atol=1e-5, rtol=1e-5)

    print("KERNEL_OK")
</pallas_src>

<mosaic_0001>
module attributes {stable_mosaic.version = 11 : i64} {
  func.func @_ray_dirs_kernel(%arg0: i32, %arg1: i32, %arg2: memref<18xf32, #tpu.memory_space<smem>>, %arg3: memref<2x256xf32, #tpu.memory_space<vmem>>, %arg4: memref<1x3x256xf32, #tpu.memory_space<vmem>>) attributes {dimension_semantics = [#tpu.dimension_semantics<parallel>, #tpu.dimension_semantics<parallel>], iteration_bounds = array<i64: 1, 2>, scalar_prefetch = 0 : i64, scratch_operands = 0 : i64, tpu.core_type = #tpu.core_type<tc>, window_params = [{transform_indices = @transform_0, window_bounds = array<i64: 18>}, {transform_indices = @transform_1, window_bounds = array<i64: 2, 256>}, {transform_indices = @transform_2, window_bounds = array<i64: 1, 3, 256>}]} {
    %c9_i32 = arith.constant 9 : i32
    %0 = arith.muli %arg1, %c9_i32 : i32
    %c0 = arith.constant 0 : index
    %c0_0 = arith.constant 0 : index
    %1 = vector.load %arg3[%c0, %c0_0] : memref<2x256xf32, #tpu.memory_space<vmem>>, vector<1x256xf32>
    %c1 = arith.constant 1 : index
    %c0_1 = arith.constant 0 : index
    %2 = vector.load %arg3[%c1, %c0_1] : memref<2x256xf32, #tpu.memory_space<vmem>>, vector<1x256xf32>
    %c0_i32 = arith.constant 0 : i32
    %3 = arith.addi %0, %c0_i32 : i32
    %4 = arith.index_cast %3 : i32 to index
    %5 = memref.load %arg2[%4] : memref<18xf32, #tpu.memory_space<smem>>
    %6 = vector.broadcast %5 : f32 to vector<1x256xf32>
    %7 = arith.mulf %6, %1 : vector<1x256xf32>
    %c3_i32 = arith.constant 3 : i32
    %8 = arith.addi %0, %c3_i32 : i32
    %9 = arith.index_cast %8 : i32 to index
    %10 = memref.load %arg2[%9] : memref<18xf32, #tpu.memory_space<smem>>
    %11 = vector.broadcast %10 : f32 to vector<1x256xf32>
    %12 = arith.mulf %11, %2 : vector<1x256xf32>
    %13 = arith.addf %7, %12 : vector<1x256xf32>
    %c6_i32 = arith.constant 6 : i32
    %14 = arith.addi %0, %c6_i32 : i32
    %15 = arith.index_cast %14 : i32 to index
    %16 = memref.load %arg2[%15] : memref<18xf32, #tpu.memory_space<smem>>
    %17 = vector.broadcast %16 : f32 to vector<1x256xf32>
    %18 = arith.addf %13, %17 : vector<1x256xf32>
    %c1_i32 = arith.constant 1 : i32
    %19 = arith.addi %0, %c1_i32 : i32
    %20 = arith.index_cast %19 : i32 to index
    %21 = memref.load %arg2[%20] : memref<18xf32, #tpu.memory_space<smem>>
    %22 = vector.broadcast %21 : f32 to vector<1x256xf32>
    %23 = arith.mulf %22, %1 : vector<1x256xf32>
    %c4_i32 = arith.constant 4 : i32
    %24 = arith.addi %0, %c4_i32 : i32
    %25 = arith.index_cast %24 : i32 to index
    %26 = memref.load %arg2[%25] : memref<18xf32, #tpu.memory_space<smem>>
    %27 = vector.broadcast %26 : f32 to vector<1x256xf32>
    %28 = arith.mulf %27, %2 : vector<1x256xf32>
    %29 = arith.addf %23, %28 : vector<1x256xf32>
    %c7_i32 = arith.constant 7 : i32
    %30 = arith.addi %0, %c7_i32 : i32
    %31 = arith.index_cast %30 : i32 to index
    %32 = memref.load %arg2[%31] : memref<18xf32, #tpu.memory_space<smem>>
    %33 = vector.broadcast %32 : f32 to vector<1x256xf32>
    %34 = arith.addf %29, %33 : vector<1x256xf32>
    %c2_i32 = arith.constant 2 : i32
    %35 = arith.addi %0, %c2_i32 : i32
    %36 = arith.index_cast %35 : i32 to index
    %37 = memref.load %arg2[%36] : memref<18xf32, #tpu.memory_space<smem>>
    %38 = vector.broadcast %37 : f32 to vector<1x256xf32>
    %39 = arith.mulf %38, %1 : vector<1x256xf32>
    %c5_i32 = arith.constant 5 : i32
    %40 = arith.addi %0, %c5_i32 : i32
    %41 = arith.index_cast %40 : i32 to index
    %42 = memref.load %arg2[%41] : memref<18xf32, #tpu.memory_space<smem>>
    %43 = vector.broadcast %42 : f32 to vector<1x256xf32>
    %44 = arith.mulf %43, %2 : vector<1x256xf32>
    %45 = arith.addf %39, %44 : vector<1x256xf32>
    %c8_i32 = arith.constant 8 : i32
    %46 = arith.addi %0, %c8_i32 : i32
    %47 = arith.index_cast %46 : i32 to index
    %48 = memref.load %arg2[%47] : memref<18xf32, #tpu.memory_space<smem>>
    %49 = vector.broadcast %48 : f32 to vector<1x256xf32>
    %50 = arith.addf %45, %49 : vector<1x256xf32>
    %51 = arith.mulf %18, %18 : vector<1x256xf32>
    %52 = arith.mulf %34, %34 : vector<1x256xf32>
    %53 = arith.addf %51, %52 : vector<1x256xf32>
    %54 = arith.mulf %50, %50 : vector<1x256xf32>
    %55 = arith.addf %53, %54 : vector<1x256xf32>
    %cst = arith.constant 1.000000e-24 : f32
    %56 = vector.broadcast %cst : f32 to vector<1x256xf32>
    %57 = arith.maximumf %55, %56 : vector<1x256xf32>
    %58 = math.rsqrt %57 : vector<1x256xf32>
    %59 = arith.mulf %18, %58 : vector<1x256xf32>
    %c0_2 = arith.constant 0 : index
    %c0_3 = arith.constant 0 : index
    %c0_4 = arith.constant 0 : index
    %60 = vector.load %arg4[%c0_2, %c0_3, %c0_4] : memref<1x3x256xf32, #tpu.memory_space<vmem>>, vector<1x1x256xf32>
    %61 = vector.shape_cast %60 : vector<1x1x256xf32> to vector<1x256xf32>
    %62 = vector.shape_cast %59 : vector<1x256xf32> to vector<1x1x256xf32>
    tpu.vector_store %arg4[%c0_2, %c0_3, %c0_4], %62 {strides = array<i32>} : memref<1x3x256xf32, #tpu.memory_space<vmem>>, vector<1x1x256xf32>,
    %63 = arith.mulf %34, %58 : vector<1x256xf32>
    %c0_5 = arith.constant 0 : index
    %c1_6 = arith.constant 1 : index
    %c0_7 = arith.constant 0 : index
    %64 = vector.load %arg4[%c0_5, %c1_6, %c0_7] : memref<1x3x256xf32, #tpu.memory_space<vmem>>, vector<1x1x256xf32>
    %65 = vector.shape_cast %64 : vector<1x1x256xf32> to vector<1x256xf32>
    %66 = vector.shape_cast %63 : vector<1x256xf32> to vector<1x1x256xf32>
    tpu.vector_store %arg4[%c0_5, %c1_6, %c0_7], %66 {strides = array<i32>} : memref<1x3x256xf32, #tpu.memory_space<vmem>>, vector<1x1x256xf32>,
    %67 = arith.mulf %50, %58 : vector<1x256xf32>
    %c0_8 = arith.constant 0 : index
    %c2 = arith.constant 2 : index
    %c0_9 = arith.constant 0 : index
    %68 = vector.load %arg4[%c0_8, %c2, %c0_9] : memref<1x3x256xf32, #tpu.memory_space<vmem>>, vector<1x1x256xf32>
    %69 = vector.shape_cast %68 : vector<1x1x256xf32> to vector<1x256xf32>
    %70 = vector.shape_cast %67 : vector<1x256xf32> to vector<1x1x256xf32>
    tpu.vector_store %arg4[%c0_8, %c2, %c0_9], %70 {strides = array<i32>} : memref<1x3x256xf32, #tpu.memory_space<vmem>>, vector<1x1x256xf32>,
    return
  }
  func.func @transform_0(%arg0: i32, %arg1: i32) -> i32 {
    %c0_i32 = arith.constant 0 : i32
    %c0_i32_0 = arith.constant 0 : i32
    return %c0_i32 : i32
  }
  func.func @transform_1(%arg0: i32, %arg1: i32) -> (i32, i32) {
    %c0_i32 = arith.constant 0 : i32
    %c0_i32_0 = arith.constant 0 : i32
    return %c0_i32, %arg0 : i32, i32
  }
  func.func @transform_2(%arg0: i32, %arg1: i32) -> (i32, i32, i32) {
    %c0_i32 = arith.constant 0 : i32
    %c0_i32_0 = arith.constant 0 : i32
    return %arg1, %c0_i32, %arg0 : i32, i32, i32
  }
}

</mosaic_0001>

<llo_original>
// kernel: tpu_custom_call.1
$region0: #{tpu_custom_call.1}
  #allocation0 [shape = 'u32[]', space=smem, size = 0x4, offset = 0x4, fixed_abs, tag = 'smem constant byte address 0x4 - core index']
  #allocation1 [shape = 'u32[72,128]{1,0:T(1,128)}', space=vmem, size = 0x9000, scoped, tag = 'internal scratch']
  %s0 = inlined_call_operand.hbm [shape: f32[18], index: 0, kind: input, shape index: {}]
  %s1 = inlined_call_operand.hbm [shape: f32[2,256], index: 1, kind: input, shape index: {}]
  %s2 = inlined_call_operand.vmem [shape: f32[2,3,256], index: 2, kind: output, shape index: {}]
  %s3 = sld [smem:[#allocation0]]
  $region49: #{tpu_custom_call.1} parent=0
    _
  %s5 = ssub.s32 1, %s3
  %s6 = scalar_select 0, %s5, %s3
  $region1: #{tpu_custom_call.1} parent=0
    #allocation2 [shape = 'u8[512]{0}', space=smem, size = 0x200, scoped, tag = 'input window, operand 0, single buffered']
    #allocation3 [shape = 's32[2]{0}', space=sflag, size = 0x8, scoped, tag = 'scoped memory for tpu_custom_call.1']
    #allocation4 [shape = 's32[2]{0}', space=sflag, size = 0x8, scoped, tag = 'scoped memory for tpu_custom_call.1']
    #allocation5 [shape = 'u8[2048]{0}', space=vmem, size = 0x800, scoped, tag = 'input window, operand 1, single buffered']
    %7 = vsyncpa [#allocation4], 0
    %8 = vsyncpa [#allocation3], 0
    loop: start=0, step=1, limit=4
    $region2: #{tpu_custom_call.1} parent=1 // loop_pre_header
      _
    $region3: #{tpu_custom_call.1} parent=1 // loop_header
      %s10 = sphi 0, %s14
      %p11 = scmp.ge.s32.totalorder %s10, 4
      %s17 = sphi 0, %s29
      %s18 = sphi 0, %s25
      %s19 = sphi 0, %s17
      %s20 = sphi 0, %s18
      %s21 = sphi 0, %s19
      %s22 = sphi 0, %s20
      %s30 = sphi 0, %s30
      %s32 = sphi 0, %s30
      %s33 = sphi 0, %s32
      %s47 = sphi 0, %s33
      %s53 = sphi 0, %s55
      %s56 = sphi 0, %s53
      %s57 = sphi 0, %s56
      %s73 = sphi 0, %s57
      %s81 = sphi 0, %s83
      %s84 = sphi 0, %s81
      %s85 = sphi 0, %s84
      %s101 = sphi 0, %s85
    $region4: #{tpu_custom_call.1} parent=1 // loop_header_branch
      %13 = sbr.rel (%p11) target = $region8
    $region5: #{tpu_custom_call.1} parent=1 // loop_body
      %s15 = ssub.s32 %s10, 1
      %s16 = ssub.s32 %s10, 2
      %s23 = sadd.s32 1, %s18
      %p24 = scmp.ge.s32.totalorder %s23, 2
      %s25 = scalar_select %p24, 0, %s23
      %s26 = sadd.s32 1, %s17
      %s27 = scalar_select %p24, %s26, %s17
      %p28 = scmp.ge.s32.totalorder %s27, 1
      %s29 = scalar_select %p28, 0, %s27
      %s31 = sadd.s32 %s30, 1
      %p34 = scmp.eq.s32.totalorder %s10, 1
      %p35 = scmp.ne.s32.totalorder %s30, %s32
      %p36 = scmp.eq.s32.totalorder %s10, 0
      %p37 = por %p35, %p36
      %p38 = scmp.ne.s32.totalorder %s30, %s32
      %p39 = scmp.eq.s32.totalorder %s15, 1
      %p40 = por %p38, %p39
      %p41 = scmp.ne.s32.totalorder %s32, %s33
      %p42 = scmp.eq.s32.totalorder %s15, 0
      %p43 = por %p41, %p42
      %p44 = scmp.ne.s32.totalorder %s32, %s33
      %p45 = scmp.eq.s32.totalorder %s16, 1
      %p46 = por %p44, %p45
      %p48 = scmp.ne.s32.totalorder %s33, %s47
      %p49 = scmp.eq.s32.totalorder %s16, 0
      %p50 = por %p48, %p49
      %s51 = ssub.s32 %s17, %s29
      %p52 = scmp.eq.s32.totalorder %s51, 0
      %s54 = sadd.s32 %s53, 1
      %s55 = scalar_select %p52, %s53, %s54
      %p58 = pneg %p52
      %p59 = scmp.eq.s32.totalorder %s10, 1
      %p60 = por %p58, %p59
      %p61 = scmp.ne.s32.totalorder %s53, %s56
      %p62 = scmp.eq.s32.totalorder %s10, 0
      %p63 = por %p61, %p62
      %p64 = scmp.ne.s32.totalorder %s53, %s56
      %p65 = scmp.eq.s32.totalorder %s15, 1
      %p66 = por %p64, %p65
      %p67 = scmp.ne.s32.totalorder %s56, %s57
      %p68 = scmp.eq.s32.totalorder %s15, 0
      %p69 = por %p67, %p68
      %p70 = scmp.ne.s32.totalorder %s56, %s57
      %p71 = scmp.eq.s32.totalorder %s16, 1
      %p72 = por %p70, %p71
      %p74 = scmp.ne.s32.totalorder %s57, %s73
      %p75 = scmp.eq.s32.totalorder %s16, 0
      %p76 = por %p74, %p75
      %s77 = ssub.s32 %s18, %s25
      %s78 = ssub.s32 %s17, %s29
      %s79 = sor.u32 %s77, %s78
      %p80 = scmp.eq.s32.totalorder %s79, 0
      %s82 = sadd.s32 %s81, 1
      %s83 = scalar_select %p80, %s81, %s82
      %p86 = pneg %p80
      %p87 = scmp.eq.s32.totalorder %s10, 1
      %p88 = por %p86, %p87
      %p89 = scmp.ne.s32.totalorder %s81, %s84
      %p90 = scmp.eq.s32.totalorder %s10, 0
      %p91 = por %p89, %p90
      %p92 = scmp.ne.s32.totalorder %s81, %s84
      %p93 = scmp.eq.s32.totalorder %s15, 1
      %p94 = por %p92, %p93
      %p95 = scmp.ne.s32.totalorder %s84, %s85
      %p96 = scmp.eq.s32.totalorder %s15, 0
      %p97 = por %p95, %p96
      %p98 = scmp.ne.s32.totalorder %s84, %s85
      %p99 = scmp.eq.s32.totalorder %s16, 1
      %p100 = por %p98, %p99
      %p102 = scmp.ne.s32.totalorder %s85, %s101
      %p103 = scmp.eq.s32.totalorder %s16, 0
      %p104 = por %p102, %p103
      %p105 = scmp.le.s32.totalorder 1, %s10
      %p106 = scmp.lt.s32.totalorder %s10, 3
      %p107 = pnand %p105, %p106
      %p108 = pneg %p107
      // Predicated region
      $region9: #{tpu_custom_call.1} parent=5 // pred_check
        _
      $region10: #{tpu_custom_call.1} parent=5 // pred_check_branch
        %110 = sbr.rel (%p107) target = $region12
      $region11: #{tpu_custom_call.1} parent=5 // pred_region
        %s111 = ssub.s32 %s10, 1
        // Predicated region
        $region13: #{tpu_custom_call.1} parent=11 // pred_check
          %p112 = pneg %p43
        $region14: #{tpu_custom_call.1} parent=11 // pred_check_branch
          %114 = sbr.rel (%p112) target = $region16
        $region15: #{tpu_custom_call.1} parent=11 // pred_region
          %116 = vsyncadd [#allocation4], 0
          %s118 = sshll.u32 %s0, 4
          %s119 = int_to_ptr.hbm [resolvable:$true] %s118
          %121 = dma.hbm_to_smem %s119, 16, [#allocation2], [#allocation4]
        $region16: #{tpu_custom_call.1} parent=11 // pred_fallthru
          _
        // Predicated region
        $region17: #{tpu_custom_call.1} parent=11 // pred_check
          %p122 = pneg %p69
        $region18: #{tpu_custom_call.1} parent=11 // pred_check_branch
          %124 = sbr.rel (%p122) target = $region20
        $region19: #{tpu_custom_call.1} parent=11 // pred_region
          %s125 = smul.u32 2, %s19
          %127 = vsyncadd [#allocation3], 0
          %s128 = smul.addr %s125, 2
          %s129 = scalar_lea.hbm %s1, %s128
          %s131 = sshll.u32 %s129, 4
          %s132 = int_to_ptr.hbm [resolvable:$true] %s131
          %s133 = sshll.u32 [#allocation5], 4
          %s134 = int_to_ptr.vmem [resolvable:$true] %s133
          %136 = dma.hbm_to_vmem [thread:$0]  %s132, 64, %s134, [#allocation3]
        $region20: #{tpu_custom_call.1} parent=11 // pred_fallthru
          _
      $region12: #{tpu_custom_call.1} parent=5 // pred_fallthru
        _
      %p137 = scmp.lt.s32.totalorder %s10, 2
      // Predicated region
      $region21: #{tpu_custom_call.1} parent=5 // pred_check
        %p138 = pneg %p137
      $region22: #{tpu_custom_call.1} parent=5 // pred_check_branch
        %140 = sbr.rel (%p138) target = $region24
      $region23: #{tpu_custom_call.1} parent=5 // pred_region
        _
      $region24: #{tpu_custom_call.1} parent=5 // pred_fallthru
        _
      %p141 = scmp.le.s32.totalorder 1, %s10
      %p142 = scmp.lt.s32.totalorder %s10, 3
      %p143 = pnand %p141, %p142
      %p144 = pneg %p143
      // Predicated region
      $region25: #{tpu_custom_call.1} parent=5 // pred_check
        _
      $region26: #{tpu_custom_call.1} parent=5 // pred_check_branch
        %146 = sbr.rel (%p143) target = $region28
      $region27: #{tpu_custom_call.1} parent=5 // pred_region
        %s147 = ssub.s32 %s10, 1
        // Predicated region
        $region29: #{tpu_custom_call.1} parent=27 // pred_check
          %p148 = pneg %p43
        $region30: #{tpu_custom_call.1} parent=27 // pred_check_branch
          %150 = sbr.rel (%p148) target = $region32
        $region31: #{tpu_custom_call.1} parent=27 // pred_region
          %152 = dma.done [#allocation4], 16
        $region32: #{tpu_custom_call.1} parent=27 // pred_fallthru
          _
        // Predicated region
        $region33: #{tpu_custom_call.1} parent=27 // pred_check
          %p153 = pneg %p69
        $region34: #{tpu_custom_call.1} parent=27 // pred_check_branch
          %155 = sbr.rel (%p153) target = $region36
        $region35: #{tpu_custom_call.1} parent=27 // pred_region
          %157 = dma.done [#allocation3], 64
        $region36: #{tpu_custom_call.1} parent=27 // pred_fallthru
          _
        %158 = sfence
        %p159 = pneg %p43
        %p160 = pneg %p40
        %p161 = pneg %p69
        %p162 = pneg %p66
        %p163 = pneg %p97
        %p164 = pneg %p94
        %s165 = smul.u32 2, %s19
        %p166 = scmp.lt.s32.totalorder %s20, 1
        %s167 = scalar_select %p166, %s20, 1
        %p168 = scmp.lt.s32.totalorder %s165, 1
        %s169 = scalar_select %p168, %s165, 1
        %s170 = smul.addr %s167, 2
        %s171 = sadd.s32 %s169, %s170
        %s172 = smul.addr %s171, 4
        %s173 = scalar_lea.vmem %s2, %s172
        %s174 = smul.u32 2, %s19
        %s175 = smul.u32 2, %s19
        %p176 = scmp.lt.s32.totalorder %s20, 1
        %s177 = scalar_select %p176, %s20, 1
        %p178 = scmp.lt.s32.totalorder %s175, 1
        %s179 = scalar_select %p178, %s175, 1
        %s180 = smul.addr %s177, 2
        %s181 = sadd.s32 %s179, %s180
        %s182 = smul.addr %s181, 4
        %s183 = scalar_lea.vmem %s2, %s182
        %s184 = smul.u32 2, %s19
        %s185 = smul.u32 %s20, 9
        %v186 = vld [vmem:[#allocation5] ss:$2 sm:$0x3]
        %s187 = scalar_lea.vmem [#allocation5], 1
        %v188 = vld [vmem:[%s187] ss:$2 sm:$0x3]
        %s189 = sld [smem:[#allocation2 + %s185]]
        %v190 = vstv %s189
        %v191 = vmul.f32 %v190, %v186
        %s192 = sadd.s32 %s185, 3
        %s193 = sld [smem:[#allocation2 + %s192]]
        %v194 = vstv %s193
        %v195 = vmul.f32 %v194, %v188
        %v196 = vadd.f32 %v191, %v195
        %s197 = sadd.s32 %s185, 6
        %s198 = sld [smem:[#allocation2 + %s197]]
        %v199 = vstv %s198
        %v200 = vadd.f32 %v196, %v199
        %s201 = sadd.s32 %s185, 1
        %s202 = sld [smem:[#allocation2 + %s201]]
        %v203 = vstv %s202
        %v204 = vmul.f32 %v203, %v186
        %s205 = sadd.s32 %s185, 4
        %s206 = sld [smem:[#allocation2 + %s205]]
        %v207 = vstv %s206
        %v208 = vmul.f32 %v207, %v188
        %v209 = vadd.f32 %v204, %v208
        %s210 = sadd.s32 %s185, 7
        %s211 = sld [smem:[#allocation2 + %s210]]
        %v212 = vstv %s211
        %v213 = vadd.f32 %v209, %v212
        %s214 = sadd.s32 %s185, 2
        %s215 = sld [smem:[#allocation2 + %s214]]
        %v216 = vstv %s215
        %v217 = vmul.f32 %v216, %v186
        %s218 = sadd.s32 %s185, 5
        %s219 = sld [smem:[#allocation2 + %s218]]
        %v220 = vstv %s219
        %v221 = vmul.f32 %v220, %v188
        %v222 = vadd.f32 %v217, %v221
        %s223 = sadd.s32 %s185, 8
        %s224 = sld [smem:[#allocation2 + %s223]]
        %v225 = vstv %s224
        %v226 = vadd.f32 %v222, %v225
        %v227 = vmul.f32 %v200, %v200
        %v228 = vmul.f32 %v213, %v213
        %v229 = vadd.f32 %v227, %v228
        %v230 = vmul.f32 %v226, %v226
        %v231 = vadd.f32 %v229, %v230
        %v232 = vmax.f32 %v231, 1e-24
        %v233 = vrsqrt.pop %v232
        %v234 = vmul.f32 %v233, %v232
        %v235 = vmul.f32 %v234, %v233
        %v236 = vmul.f32 0.5, %v235
        %v237 = vsub.f32 1.5, %v236
        %v238 = vmul.f32 %v233, %v237
        %vm239 = vweird.f32 %v232
        %vm240 = vweird.f32 %v233
        %vm241 = vmor %vm239, %vm240
        %v242 = vsel %vm241, %v233, %v238
        %v243 = vmul.f32 %v200, %v242
        %v244 = vlaneseq
        %vm245 = vcmp.ge.s32.totalorder %v244, 0
        %vm246 = vcmp.lt.s32.totalorder %v244, 256
        %vm247 = vmand %vm245, %vm246
        %248 = vst.msk [vmem:[%s183] ss:$4 sm:$0x3] %vm247, %v243
        %v249 = vmul.f32 %v213, %v242
        %s250 = scalar_lea.vmem %s183, 1
        %251 = vst.msk [vmem:[%s250] ss:$4 sm:$0x3] %vm247, %v249
        %v252 = vmul.f32 %v226, %v242
        %s253 = scalar_lea.vmem %s183, 2
        %254 = vst.msk [vmem:[%s253] ss:$4 sm:$0x3] %vm247, %v252
        %s255 = smul.u32 2, %s19
        %p256 = scmp.lt.s32.totalorder %s20, 1
        %s257 = scalar_select %p256, %s20, 1
        %p258 = scmp.lt.s32.totalorder %s255, 1
        %s259 = scalar_select %p258, %s255, 1
        %s260 = smul.addr %s257, 2
        %s261 = sadd.s32 %s259, %s260
        %s262 = smul.addr %s261, 4
        %s263 = scalar_lea.vmem %s2, %s262
        // Predicated region
        $region37: #{tpu_custom_call.1} parent=27 // pred_check
          %p264 = pneg %p94
        $region38: #{tpu_custom_call.1} parent=27 // pred_check_branch
          %266 = sbr.rel (%p264) target = $region40
        $region39: #{tpu_custom_call.1} parent=27 // pred_region
          %s267 = smul.u32 2, %s19
        $region40: #{tpu_custom_call.1} parent=27 // pred_fallthru
          _
      $region28: #{tpu_custom_call.1} parent=5 // pred_fallthru
        _
      %p268 = scmp.le.s32.totalorder 2, %s10
      // Predicated region
      $region41: #{tpu_custom_call.1} parent=5 // pred_check
        %p269 = pneg %p268
      $region42: #{tpu_custom_call.1} parent=5 // pred_check_branch
        %271 = sbr.rel (%p269) target = $region44
      $region43: #{tpu_custom_call.1} parent=5 // pred_region
        %s272 = ssub.s32 %s10, 2
        // Predicated region
        $region45: #{tpu_custom_call.1} parent=43 // pred_check
          %p273 = pneg %p100
        $region46: #{tpu_custom_call.1} parent=43 // pred_check_branch
          %275 = sbr.rel (%p273) target = $region48
        $region47: #{tpu_custom_call.1} parent=43 // pred_region
          %s276 = smul.u32 2, %s21
          %p277 = scmp.lt.s32.totalorder %s22, 1
          %s278 = scalar_select %p277, %s22, 1
          %p279 = scmp.lt.s32.totalorder %s276, 1
          %s280 = scalar_select %p279, %s276, 1
          %s281 = smul.addr %s278, 2
          %s282 = sadd.s32 %s280, %s281
          %s283 = smul.addr %s282, 4
          %s284 = scalar_lea.vmem %s2, %s283
        $region48: #{tpu_custom_call.1} parent=43 // pred_fallthru
          _
      $region44: #{tpu_custom_call.1} parent=5 // pred_fallthru
        _
    $region6: #{tpu_custom_call.1} parent=1 // loop_footer
      %s14 = sadd.s32 1, %s10
    $region7: #{tpu_custom_call.1} parent=1 // loop_footer_branch
      %9 = sbr.rel target = $region3
    $region8: #{tpu_custom_call.1} parent=1 // loop_exit
      _
    %285 = vsyncpa [#allocation3], 1
    %s286 = scalar_lea.sflag [#allocation3], 1
    %287 = vsyncpa %s286, 1
    %288 = vsyncpa [#allocation4], 1
    %s289 = scalar_lea.sflag [#allocation4], 1
    %290 = vsyncpa %s289, 1

</llo_original>
